<compile_context>
chip_gen: v7x
topology: tpu7x:2x2x1
jax: 0.10.0
libtpu: 0.0.40
codegen_flags: <defaults>
</compile_context>

<pallas_src>
import numpy as np
import jax
import jax.numpy as jnp
from jax import lax
from jax.experimental import pallas as pl
from jax.experimental.pallas import tpu as pltpu

EPS = 1e-5
NUM_GROUPS = 2
INV_SQRT2 = 0.7071067811865476
_VMEM_LIMIT = 48 * 1024 * 1024    # scoped VMEM limit: headroom on v7x (64 MiB phys), v5e/v6e (128 MiB)
_TILE_BUDGET = 24 * 1024 * 1024   # budget for double-buffered x + out tiles used by the tile picker


def _pick_hw_tile(hw, c4, cin):
    """Largest HW tile that is a multiple of 128 dividing HW and fits the VMEM budget."""
    if hw % 128 != 0:
        return hw                                    # full extent (block == array dim)
    bytes_per_col = 4 * (c4 + cin) * 2               # f32, x tile + out tile, double-buffered
    best = 128
    t = 128
    while t <= hw:
        if hw % t == 0 and t * bytes_per_col <= _TILE_BUDGET:
            best = t
        t += 128
    return best


def _stats_kernel(x_ref, w_ref, s1_ref, s2_ref):
    # x_ref: (1, Cin, THW)   w_ref: (C4, Cin)   s1/s2_ref: (1, C4, 1) f32 accumulators
    @pl.when(pl.program_id(1) == 0)
    def _():
        s1_ref[...] = jnp.zeros_like(s1_ref)
        s2_ref[...] = jnp.zeros_like(s2_ref)

    # Fused transposed conv (all 4 sub-pixel taps), no bias: (C4, THW).
    yd = jnp.dot(w_ref[...], x_ref[0], preferred_element_type=jnp.float32)
    s1_ref[0] += jnp.sum(yd, axis=1, keepdims=True)
    s2_ref[0] += jnp.sum(yd * yd, axis=1, keepdims=True)


def _norm_gelu_kernel(x_ref, w_ref, scale_ref, shift_ref, o_ref):
    # Recompute the nearly-free K=Cin matmul, apply folded GroupNorm affine + exact-erf GELU.
    # Lane dim is THW (dense, unmasked stores); scale/shift broadcast from (C4, 1).
    yd = jnp.dot(w_ref[...], x_ref[0], preferred_element_type=jnp.float32)   # (C4, THW)
    out = yd * scale_ref[0] + shift_ref[0]
    o_ref[0] = 0.5 * out * (1.0 + lax.erf(out * INV_SQRT2))


def upsample_block(x_nchw, weight, bias, gamma, beta):
    """x_nchw: (N, Cin, H, W); weight: (Cin, Cout, 2, 2) as torch ConvTranspose2d. Returns NCHW."""
    N, Cin, H, W = x_nchw.shape
    Cin_w, Cout, kh, kw = weight.shape
    assert Cin_w == Cin and (kh, kw) == (2, 2)
    assert Cout % NUM_GROUPS == 0
    HW = H * W
    C4 = 4 * Cout
    cg = Cout // NUM_GROUPS
    f32 = jnp.float32

    # --- layout plumbing (wrapper only) ---
    x_flat = x_nchw.reshape(N, Cin, HW).astype(f32)                     # free reshape (no transpose)
    # tap-major fused weight: row r = (a*2+b)*Cout + c  <-  weight[:, c, a, b]
    w_k = jnp.transpose(weight, (2, 3, 1, 0)).reshape(C4, Cin).astype(f32)

    thw = _pick_hw_tile(HW, C4, Cin)
    n_tiles = HW // thw

    cparams_stats = pltpu.CompilerParams(
        dimension_semantics=("parallel", "arbitrary"), vmem_limit_bytes=_VMEM_LIMIT)
    cparams_norm = pltpu.CompilerParams(
        dimension_semantics=("parallel", "parallel"), vmem_limit_bytes=_VMEM_LIMIT)

    # ---- pass 1: per-column sum / sum-of-squares of the conv output (no bias) ----
    s1, s2 = pl.pallas_call(
        _stats_kernel,
        out_shape=(jax.ShapeDtypeStruct((N, C4, 1), f32),
                   jax.ShapeDtypeStruct((N, C4, 1), f32)),
        grid_spec=pltpu.PrefetchScalarGridSpec(
            num_scalar_prefetch=0,
            grid=(N, n_tiles),
            in_specs=[
                pl.BlockSpec((1, Cin, thw), lambda n, t: (n, 0, t)),
                pl.BlockSpec((C4, Cin), lambda n, t: (0, 0)),
            ],
            out_specs=[
                pl.BlockSpec((1, C4, 1), lambda n, t: (n, 0, 0)),
                pl.BlockSpec((1, C4, 1), lambda n, t: (n, 0, 0)),
            ],
        ),
        compiler_params=cparams_stats,
    )(x_flat, w_k)

    # ---- fold bias + GroupNorm stats + affine into per-row scale/shift (tiny, wrapper-side) ----
    s1 = s1[..., 0]                                         # (N, C4)
    s2 = s2[..., 0]                                         # (N, C4)
    bias_r = jnp.tile(bias.astype(f32), 4)                  # (C4,) per-row (tap-major) params
    gamma_r = jnp.tile(gamma.astype(f32), 4)
    beta_r = jnp.tile(beta.astype(f32), 4)
    sum_y = s1 + HW * bias_r                                # column sums of y = conv + bias
    sum_y2 = s2 + 2.0 * bias_r * s1 + HW * bias_r * bias_r
    group_id = (jnp.arange(C4) % Cout) // cg                # (C4,) group per row
    onehot = (group_id[:, None] == jnp.arange(NUM_GROUPS)[None, :]).astype(f32)   # (C4, G)
    n_per_group = HW * (C4 // NUM_GROUPS)
    mean_g = (sum_y @ onehot) / n_per_group                 # (N, G)
    var_g = jnp.maximum((sum_y2 @ onehot) / n_per_group - mean_g * mean_g, 0.0)
    # TODO(synk): for very large H*W switch to a two-pass centered variance to avoid
    # E[y^2]-E[y]^2 cancellation drift in the single-pass form.
    rstd_g = lax.rsqrt(var_g + EPS)                         # (N, G)
    mean_r = mean_g[:, group_id]                            # (N, C4)
    rstd_r = rstd_g[:, group_id]
    scale = (gamma_r * rstd_r).reshape(N, C4, 1)
    shift = (beta_r + (bias_r - mean_r) * gamma_r * rstd_r).reshape(N, C4, 1)

    # ---- pass 2: recompute conv per tile, normalize + GELU, dense (lane = HW) stores ----
    out = pl.pallas_call(
        _norm_gelu_kernel,
        out_shape=jax.ShapeDtypeStruct((N, C4, HW), f32),
        grid_spec=pltpu.PrefetchScalarGridSpec(
            num_scalar_prefetch=0,
            grid=(N, n_tiles),
            in_specs=[
                pl.BlockSpec((1, Cin, thw), lambda n, t: (n, 0, t)),
                pl.BlockSpec((C4, Cin), lambda n, t: (0, 0)),
                pl.BlockSpec((1, C4, 1), lambda n, t: (n, 0, 0)),
                pl.BlockSpec((1, C4, 1), lambda n, t: (n, 0, 0)),
            ],
            out_specs=pl.BlockSpec((1, C4, thw), lambda n, t: (n, 0, t)),
        ),
        compiler_params=cparams_norm,
    )(x_flat, w_k, scale, shift)

    # sub-pixel interleave (single wrapper transpose): (N, 4*Cout, HW) -> (N, Cout, 2H, 2W)
    out = out.reshape(N, 2, 2, Cout, H, W)
    out = jnp.transpose(out, (0, 3, 4, 1, 5, 2)).reshape(N, Cout, 2 * H, 2 * W)
    return out


def reference(x_nchw, weight, bias, gamma, beta):
    """Pure-JAX reference of the torch forward pass (NCHW)."""
    N, Cin, H, W = x_nchw.shape
    Cout = weight.shape[1]
    y = jnp.einsum('ncij,coab->noiajb', x_nchw, weight)           # (N,Cout,H,2,W,2)
    y = y.reshape(N, Cout, 2 * H, 2 * W) + bias[None, :, None, None]
    yg = y.reshape(N, NUM_GROUPS, Cout // NUM_GROUPS, 2 * H, 2 * W)
    mean = jnp.mean(yg, axis=(2, 3, 4), keepdims=True)
    var = jnp.mean(jnp.square(yg - mean), axis=(2, 3, 4), keepdims=True)
    yn = ((yg - mean) * lax.rsqrt(var + EPS)).reshape(N, Cout, 2 * H, 2 * W)
    out = yn * gamma[None, :, None, None] + beta[None, :, None, None]
    return 0.5 * out * (1.0 + lax.erf(out * INV_SQRT2))


if __name__ == "__main__":
    N, Cin, Cout, H, W = 2, 4, 8, 16, 16

    key = jax.random.PRNGKey(0)
    kx, kw, kb, kg, kbe = jax.random.split(key, 5)

    x = jax.random.normal(kx, (N, Cin, H, W), dtype=jnp.float32)
    weight = 0.2 * jax.random.normal(kw, (Cin, Cout, 2, 2), dtype=jnp.float32)   # (Cin, Cout, kH, kW)
    bias = 0.1 * jax.random.normal(kb, (Cout,), dtype=jnp.float32)
    gamma = 1.0 + 0.1 * jax.random.normal(kg, (Cout,), dtype=jnp.float32)
    beta = 0.1 * jax.random.normal(kbe, (Cout,), dtype=jnp.float32)

    out = upsample_block(x, weight, bias, gamma, beta)
    out = jax.block_until_ready(out)

    ref = jax.block_until_ready(reference(x, weight, bias, gamma, beta))
    np.testing.assert_allclose(np.asarray(out), np.asarray(ref), rtol=1e-4, atol=1e-4)
    assert out.shape == (N, Cout, 2 * H, 2 * W)

    print("KERNEL_OK")
</pallas_src>

<mosaic_0001>
module attributes {stable_mosaic.version = 11 : i64} {
  func.func @_stats_kernel(%arg0: i32, %arg1: i32, %arg2: memref<1x4x256xf32, #tpu.memory_space<vmem>>, %arg3: memref<32x4xf32, #tpu.memory_space<vmem>>, %arg4: memref<1x32x1xf32, #tpu.memory_space<vmem>>, %arg5: memref<1x32x1xf32, #tpu.memory_space<vmem>>) attributes {dimension_semantics = [#tpu.dimension_semantics<parallel>, #tpu.dimension_semantics<arbitrary>], iteration_bounds = array<i64: 2, 1>, scalar_prefetch = 0 : i64, scratch_operands = 0 : i64, tpu.core_type = #tpu.core_type<tc>, window_params = [{transform_indices = @transform_0, window_bounds = array<i64: 1, 4, 256>}, {pipeline_mode = #tpu.pipeline_mode<synchronous>, transform_indices = @transform_1, window_bounds = array<i64: 32, 4>}, {transform_indices = @transform_2, window_bounds = array<i64: 1, 32, 1>}, {transform_indices = @transform_3, window_bounds = array<i64: 1, 32, 1>}]} {
    %c0_i32 = arith.constant 0 : i32
    %0 = arith.cmpi eq, %arg1, %c0_i32 : i32
    %1 = arith.extui %0 : i1 to i32
    %c0_i32_0 = arith.constant 0 : i32
    %2 = arith.cmpi ne, %1, %c0_i32_0 : i32
    scf.if %2 {
      %cst_19 = arith.constant 0.000000e+00 : f32
      %24 = vector.broadcast %cst_19 : f32 to vector<1x32x1xf32>
      %c0_20 = arith.constant 0 : index
      %c0_21 = arith.constant 0 : index
      %c0_22 = arith.constant 0 : index
      %25 = vector.load %arg4[%c0_20, %c0_21, %c0_22] : memref<1x32x1xf32, #tpu.memory_space<vmem>>, vector<1x32x1xf32>
      tpu.vector_store %arg4[%c0_20, %c0_21, %c0_22], %24 {strides = array<i32>} : memref<1x32x1xf32, #tpu.memory_space<vmem>>, vector<1x32x1xf32>,
      %cst_23 = arith.constant 0.000000e+00 : f32
      %26 = vector.broadcast %cst_23 : f32 to vector<1x32x1xf32>
      %c0_24 = arith.constant 0 : index
      %c0_25 = arith.constant 0 : index
      %c0_26 = arith.constant 0 : index
      %27 = vector.load %arg5[%c0_24, %c0_25, %c0_26] : memref<1x32x1xf32, #tpu.memory_space<vmem>>, vector<1x32x1xf32>
      tpu.vector_store %arg5[%c0_24, %c0_25, %c0_26], %26 {strides = array<i32>} : memref<1x32x1xf32, #tpu.memory_space<vmem>>, vector<1x32x1xf32>,
    } else {
    }
    %c0 = arith.constant 0 : index
    %c0_1 = arith.constant 0 : index
    %3 = vector.load %arg3[%c0, %c0_1] : memref<32x4xf32, #tpu.memory_space<vmem>>, vector<32x4xf32>
    %c0_2 = arith.constant 0 : index
    %c0_3 = arith.constant 0 : index
    %c0_4 = arith.constant 0 : index
    %4 = vector.load %arg2[%c0_2, %c0_3, %c0_4] : memref<1x4x256xf32, #tpu.memory_space<vmem>>, vector<1x4x256xf32>
    %5 = vector.shape_cast %4 : vector<1x4x256xf32> to vector<4x256xf32>
    %cst = arith.constant dense<0.000000e+00> : vector<32x256xf32>
    %6 = tpu.matmul %3, %5, %cst {dimension_numbers = #tpu.dot_dimension_numbers<[1], [0], [0], [1], [0, 0, 1, 1], [], []>} : vector<32x4xf32>, vector<4x256xf32>, vector<32x256xf32> -> vector<32x256xf32>
    %c0_5 = arith.constant 0 : index
    %c0_6 = arith.constant 0 : index
    %c0_7 = arith.constant 0 : index
    %7 = vector.load %arg4[%c0_5, %c0_6, %c0_7] : memref<1x32x1xf32, #tpu.memory_space<vmem>>, vector<1x32x1xf32>
    %8 = vector.shape_cast %7 : vector<1x32x1xf32> to vector<32x1xf32>
    %cst_8 = arith.constant dense<0.000000e+00> : vector<32xf32>
    %9 = vector.multi_reduction <add>, %6, %cst_8 [1] : vector<32x256xf32> to vector<32xf32>
    %10 = vector.shape_cast %9 : vector<32xf32> to vector<32x1xf32>
    %11 = arith.addf %8, %10 : vector<32x1xf32>
    %c0_9 = arith.constant 0 : index
    %c0_10 = arith.constant 0 : index
    %c0_11 = arith.constant 0 : index
    %12 = vector.load %arg4[%c0_9, %c0_10, %c0_11] : memref<1x32x1xf32, #tpu.memory_space<vmem>>, vector<1x32x1xf32>
    %13 = vector.shape_cast %12 : vector<1x32x1xf32> to vector<32x1xf32>
    %14 = vector.shape_cast %11 : vector<32x1xf32> to vector<1x32x1xf32>
    tpu.vector_store %arg4[%c0_9, %c0_10, %c0_11], %14 {strides = array<i32>} : memref<1x32x1xf32, #tpu.memory_space<vmem>>, vector<1x32x1xf32>,
    %c0_12 = arith.constant 0 : index
    %c0_13 = arith.constant 0 : index
    %c0_14 = arith.constant 0 : index
    %15 = vector.load %arg5[%c0_12, %c0_13, %c0_14] : memref<1x32x1xf32, #tpu.memory_space<vmem>>, vector<1x32x1xf32>
    %16 = vector.shape_cast %15 : vector<1x32x1xf32> to vector<32x1xf32>
    %17 = arith.mulf %6, %6 : vector<32x256xf32>
    %cst_15 = arith.constant dense<0.000000e+00> : vector<32xf32>
    %18 = vector.multi_reduction <add>, %17, %cst_15 [1] : vector<32x256xf32> to vector<32xf32>
    %19 = vector.shape_cast %18 : vector<32xf32> to vector<32x1xf32>
    %20 = arith.addf %16, %19 : vector<32x1xf32>
    %c0_16 = arith.constant 0 : index
    %c0_17 = arith.constant 0 : index
    %c0_18 = arith.constant 0 : index
    %21 = vector.load %arg5[%c0_16, %c0_17, %c0_18] : memref<1x32x1xf32, #tpu.memory_space<vmem>>, vector<1x32x1xf32>
    %22 = vector.shape_cast %21 : vector<1x32x1xf32> to vector<32x1xf32>
    %23 = vector.shape_cast %20 : vector<32x1xf32> to vector<1x32x1xf32>
    tpu.vector_store %arg5[%c0_16, %c0_17, %c0_18], %23 {strides = array<i32>} : memref<1x32x1xf32, #tpu.memory_space<vmem>>, vector<1x32x1xf32>,
    return
  }
  func.func @transform_0(%arg0: i32, %arg1: i32) -> (i32, i32, i32) {
    %c0_i32 = arith.constant 0 : i32
    %c0_i32_0 = arith.constant 0 : i32
    return %arg0, %c0_i32, %arg1 : i32, i32, i32
  }
  func.func @transform_1(%arg0: i32, %arg1: i32) -> (i32, i32) {
    %c0_i32 = arith.constant 0 : i32
    %c0_i32_0 = arith.constant 0 : i32
    %c0_i32_1 = arith.constant 0 : i32
    return %c0_i32, %c0_i32_0 : i32, i32
  }
  func.func @transform_2(%arg0: i32, %arg1: i32) -> (i32, i32, i32) {
    %c0_i32 = arith.constant 0 : i32
    %c0_i32_0 = arith.constant 0 : i32
    %c0_i32_1 = arith.constant 0 : i32
    return %arg0, %c0_i32, %c0_i32_0 : i32, i32, i32
  }
  func.func @transform_3(%arg0: i32, %arg1: i32) -> (i32, i32, i32) {
    %c0_i32 = arith.constant 0 : i32
    %c0_i32_0 = arith.constant 0 : i32
    %c0_i32_1 = arith.constant 0 : i32
    return %arg0, %c0_i32, %c0_i32_0 : i32, i32, i32
  }
}

</mosaic_0001>

<llo_original>
// kernel: tpu_custom_call.1
$region0: #{tpu_custom_call.1}
  #allocation0 [shape = 'u32[]', space=smem, size = 0x4, offset = 0x4, fixed_abs, tag = 'smem constant byte address 0x4 - core index']
  #allocation1 [shape = 'u32[144,128]{1,0:T(1,128)}', space=vmem, size = 0x12000, scoped, tag = 'internal scratch']
  %s0 = inlined_call_operand.vmem [shape: f32[2,4,256], index: 0, kind: input, shape index: {}]
  %s1 = inlined_call_operand.vmem [shape: f32[32,4], index: 1, kind: input, shape index: {}]
  %s2 = inlined_call_operand.vmem [shape: f32[2,32,1], index: 2, kind: output, shape index: {0}]
  %s3 = inlined_call_operand.vmem [shape: f32[2,32,1], index: 3, kind: output, shape index: {1}]
  %4 = xla_tuple %s2, %s3
  %s5 = sld [smem:[#allocation0]]
  $region53: #{tpu_custom_call.1} parent=0
    _
  %s7 = ssub.s32 1, %s5
  %s8 = scalar_select 0, %s7, %s5
  loop: start=0, step=1, limit=4
  $region2: #{tpu_custom_call.1} parent=0 // loop_pre_header
    _
  $region3: #{tpu_custom_call.1} parent=0 // loop_header
    %s10 = sphi 0, %s14
    %p11 = scmp.ge.s32.totalorder %s10, 4
    %s17 = sphi 0, %s29
    %s18 = sphi 0, %s25
    %s19 = sphi 0, %s17
    %s20 = sphi 0, %s18
    %s21 = sphi 0, %s19
    %s22 = sphi 0, %s20
    %s34 = sphi 0, %s36
    %s37 = sphi 0, %s34
    %s38 = sphi 0, %s37
    %s54 = sphi 0, %s38
    %s58 = sphi 0, %s58
    %s60 = sphi 0, %s58
    %s61 = sphi 0, %s60
    %s75 = sphi 0, %s61
    %s81 = sphi 0, %s83
    %s84 = sphi 0, %s81
    %s85 = sphi 0, %s84
    %s101 = sphi 0, %s85
    %s107 = sphi 0, %s109
    %s110 = sphi 0, %s107
    %s111 = sphi 0, %s110
    %s127 = sphi 0, %s111
  $region4: #{tpu_custom_call.1} parent=0 // loop_header_branch
    %13 = sbr.rel (%p11) target = $region8
  $region5: #{tpu_custom_call.1} parent=0 // loop_body
    %s15 = ssub.s32 %s10, 1
    %s16 = ssub.s32 %s10, 2
    %s23 = sadd.s32 1, %s18
    %p24 = scmp.ge.s32.totalorder %s23, 1
    %s25 = scalar_select %p24, 0, %s23
    %s26 = sadd.s32 1, %s17
    %s27 = scalar_select %p24, %s26, %s17
    %p28 = scmp.ge.s32.totalorder %s27, 2
    %s29 = scalar_select %p28, 0, %s27
    %s30 = ssub.s32 %s17, %s29
    %s31 = ssub.s32 %s18, %s25
    %s32 = sor.u32 %s30, %s31
    %p33 = scmp.eq.s32.totalorder %s32, 0
    %s35 = sadd.s32 %s34, 1
    %s36 = scalar_select %p33, %s34, %s35
    %p39 = pneg %p33
    %p40 = scmp.eq.s32.totalorder %s10, 1
    %p41 = por %p39, %p40
    %p42 = scmp.ne.s32.totalorder %s34, %s37
    %p43 = scmp.eq.s32.totalorder %s10, 0
    %p44 = por %p42, %p43
    %p45 = scmp.ne.s32.totalorder %s34, %s37
    %p46 = scmp.eq.s32.totalorder %s15, 1
    %p47 = por %p45, %p46
    %p48 = scmp.ne.s32.totalorder %s37, %s38
    %p49 = scmp.eq.s32.totalorder %s15, 0
    %p50 = por %p48, %p49
    %p51 = scmp.ne.s32.totalorder %s37, %s38
    %p52 = scmp.eq.s32.totalorder %s16, 1
    %p53 = por %p51, %p52
    %p55 = scmp.ne.s32.totalorder %s38, %s54
    %p56 = scmp.eq.s32.totalorder %s16, 0
    %p57 = por %p55, %p56
    %s59 = sadd.s32 %s58, 1
    %p62 = scmp.eq.s32.totalorder %s10, 1
    %p63 = scmp.ne.s32.totalorder %s58, %s60
    %p64 = scmp.eq.s32.totalorder %s10, 0
    %p65 = por %p63, %p64
    %p66 = scmp.ne.s32.totalorder %s58, %s60
    %p67 = scmp.eq.s32.totalorder %s15, 1
    %p68 = por %p66, %p67
    %p69 = scmp.ne.s32.totalorder %s60, %s61
    %p70 = scmp.eq.s32.totalorder %s15, 0
    %p71 = por %p69, %p70
    %p72 = scmp.ne.s32.totalorder %s60, %s61
    %p73 = scmp.eq.s32.totalorder %s16, 1
    %p74 = por %p72, %p73
    %p76 = scmp.ne.s32.totalorder %s61, %s75
    %p77 = scmp.eq.s32.totalorder %s16, 0
    %p78 = por %p76, %p77
    %s79 = ssub.s32 %s17, %s29
    %p80 = scmp.eq.s32.totalorder %s79, 0
    %s82 = sadd.s32 %s81, 1
    %s83 = scalar_select %p80, %s81, %s82
    %p86 = pneg %p80
    %p87 = scmp.eq.s32.totalorder %s10, 1
    %p88 = por %p86, %p87
    %p89 = scmp.ne.s32.totalorder %s81, %s84
    %p90 = scmp.eq.s32.totalorder %s10, 0
    %p91 = por %p89, %p90
    %p92 = scmp.ne.s32.totalorder %s81, %s84
    %p93 = scmp.eq.s32.totalorder %s15, 1
    %p94 = por %p92, %p93
    %p95 = scmp.ne.s32.totalorder %s84, %s85
    %p96 = scmp.eq.s32.totalorder %s15, 0
    %p97 = por %p95, %p96
    %p98 = scmp.ne.s32.totalorder %s84, %s85
    %p99 = scmp.eq.s32.totalorder %s16, 1
    %p100 = por %p98, %p99
    %p102 = scmp.ne.s32.totalorder %s85, %s101
    %p103 = scmp.eq.s32.totalorder %s16, 0
    %p104 = por %p102, %p103
    %s105 = ssub.s32 %s17, %s29
    %p106 = scmp.eq.s32.totalorder %s105, 0
    %s108 = sadd.s32 %s107, 1
    %s109 = scalar_select %p106, %s107, %s108
    %p112 = pneg %p106
    %p113 = scmp.eq.s32.totalorder %s10, 1
    %p114 = por %p112, %p113
    %p115 = scmp.ne.s32.totalorder %s107, %s110
    %p116 = scmp.eq.s32.totalorder %s10, 0
    %p117 = por %p115, %p116
    %p118 = scmp.ne.s32.totalorder %s107, %s110
    %p119 = scmp.eq.s32.totalorder %s15, 1
    %p120 = por %p118, %p119
    %p121 = scmp.ne.s32.totalorder %s110, %s111
    %p122 = scmp.eq.s32.totalorder %s15, 0
    %p123 = por %p121, %p122
    %p124 = scmp.ne.s32.totalorder %s110, %s111
    %p125 = scmp.eq.s32.totalorder %s16, 1
    %p126 = por %p124, %p125
    %p128 = scmp.ne.s32.totalorder %s111, %s127
    %p129 = scmp.eq.s32.totalorder %s16, 0
    %p130 = por %p128, %p129
    %p131 = scmp.le.s32.totalorder 1, %s10
    %p132 = scmp.lt.s32.totalorder %s10, 3
    %p133 = pnand %p131, %p132
    %p134 = pneg %p133
    // Predicated region
    $region9: #{tpu_custom_call.1} parent=5 // pred_check
      _
    $region10: #{tpu_custom_call.1} parent=5 // pred_check_branch
      %136 = sbr.rel (%p133) target = $region12
    $region11: #{tpu_custom_call.1} parent=5 // pred_region
      %s137 = ssub.s32 %s10, 1
      // Predicated region
      $region13: #{tpu_custom_call.1} parent=11 // pred_check
        %p138 = pneg %p71
      $region14: #{tpu_custom_call.1} parent=11 // pred_check_branch
        %140 = sbr.rel (%p138) target = $region16
      $region15: #{tpu_custom_call.1} parent=11 // pred_region
        _
      $region16: #{tpu_custom_call.1} parent=11 // pred_fallthru
        _
    $region12: #{tpu_custom_call.1} parent=5 // pred_fallthru
      _
    %p141 = scmp.lt.s32.totalorder %s10, 2
    // Predicated region
    $region17: #{tpu_custom_call.1} parent=5 // pred_check
      %p142 = pneg %p141
    $region18: #{tpu_custom_call.1} parent=5 // pred_check_branch
      %144 = sbr.rel (%p142) target = $region20
    $region19: #{tpu_custom_call.1} parent=5 // pred_region
      // Predicated region
      $region21: #{tpu_custom_call.1} parent=19 // pred_check
        %p145 = pneg %p44
      $region22: #{tpu_custom_call.1} parent=19 // pred_check_branch
        %147 = sbr.rel (%p145) target = $region24
      $region23: #{tpu_custom_call.1} parent=19 // pred_region
        %s148 = smul.u32 2, %s18
        %p149 = scmp.lt.s32.totalorder %s17, 1
        %s150 = scalar_select %p149, %s17, 1
        %p151 = scmp.lt.s32.totalorder %s148, 1
        %s152 = scalar_select %p151, %s148, 1
        %s153 = smul.addr %s150, 2
        %s154 = sadd.s32 %s152, %s153
        %s155 = smul.addr %s154, 4
        %s156 = scalar_lea.vmem %s0, %s155
        %s157 = smul.u32 2, %s18
      $region24: #{tpu_custom_call.1} parent=19 // pred_fallthru
        _
    $region20: #{tpu_custom_call.1} parent=5 // pred_fallthru
      _
    %p158 = scmp.le.s32.totalorder 1, %s10
    %p159 = scmp.lt.s32.totalorder %s10, 3
    %p160 = pnand %p158, %p159
    %p161 = pneg %p160
    // Predicated region
    $region25: #{tpu_custom_call.1} parent=5 // pred_check
      _
    $region26: #{tpu_custom_call.1} parent=5 // pred_check_branch
      %163 = sbr.rel (%p160) target = $region28
    $region27: #{tpu_custom_call.1} parent=5 // pred_region
      %s164 = ssub.s32 %s10, 1
      %s165 = smul.u32 2, %s20
      %p166 = scmp.lt.s32.totalorder %s19, 1
      %s167 = scalar_select %p166, %s19, 1
      %p168 = scmp.lt.s32.totalorder %s165, 1
      %s169 = scalar_select %p168, %s165, 1
      %s170 = smul.addr %s167, 2
      %s171 = sadd.s32 %s169, %s170
      %s172 = smul.addr %s171, 4
      %s173 = scalar_lea.vmem %s0, %s172
      %p174 = pneg %p50
      %p175 = pneg %p47
      %p176 = pneg %p71
      %p177 = pneg %p68
      %p178 = pneg %p97
      %p179 = pneg %p94
      %p180 = scmp.lt.s32.totalorder %s19, 1
      %s181 = scalar_select %p180, %s19, 1
      %s182 = smul.addr %s181, 4
      %s183 = smul.addr %s182, 8
      %s184 = scalar_lea.vmem %s2, %s183
      %p185 = pneg %p123
      %p186 = pneg %p120
      %p187 = scmp.lt.s32.totalorder %s19, 1
      %s188 = scalar_select %p187, %s19, 1
      %s189 = smul.addr %s188, 4
      %s190 = smul.addr %s189, 8
      %s191 = scalar_lea.vmem %s3, %s190
      %s192 = smul.u32 2, %s20
      %p193 = scmp.lt.s32.totalorder %s19, 1
      %s194 = scalar_select %p193, %s19, 1
      %p195 = scmp.lt.s32.totalorder %s192, 1
      %s196 = scalar_select %p195, %s192, 1
      %s197 = smul.addr %s194, 2
      %s198 = sadd.s32 %s196, %s197
      %s199 = smul.addr %s198, 4
      %s200 = scalar_lea.vmem %s0, %s199
      %s201 = smul.u32 2, %s20
      %p202 = scmp.lt.s32.totalorder %s19, 1
      %s203 = scalar_select %p202, %s19, 1
      %s204 = smul.addr %s203, 4
      %s205 = smul.addr %s204, 8
      %s206 = scalar_lea.vmem %s2, %s205
      %p207 = scmp.lt.s32.totalorder %s19, 1
      %s208 = scalar_select %p207, %s19, 1
      %s209 = smul.addr %s208, 4
      %s210 = smul.addr %s209, 8
      %s211 = scalar_lea.vmem %s3, %s210
      %p212 = scmp.eq.s32.totalorder %s20, 0
      // Predicated region
      $region29: #{tpu_custom_call.1} parent=27 // pred_check
        %p213 = pneg %p212
      $region30: #{tpu_custom_call.1} parent=27 // pred_check_branch
        %215 = sbr.rel (%p213) target = $region32
      $region31: #{tpu_custom_call.1} parent=27 // pred_region
        %vm216 = vcmask 7168
        %217 = vst.msk [vmem:[%s206] sm:$0xff] %vm216, 0.0
        %218 = vst.msk [vmem:[%s206 + $0x8] sm:$0xff] %vm216, 0.0
        %219 = vst.msk [vmem:[%s206 + $0x10] sm:$0xff] %vm216, 0.0
        %220 = vst.msk [vmem:[%s206 + $0x18] sm:$0xff] %vm216, 0.0
        %221 = vst.msk [vmem:[%s211] sm:$0xff] %vm216, 0.0
        %222 = vst.msk [vmem:[%s211 + $0x8] sm:$0xff] %vm216, 0.0
        %223 = vst.msk [vmem:[%s211 + $0x10] sm:$0xff] %vm216, 0.0
        %224 = vst.msk [vmem:[%s211 + $0x18] sm:$0xff] %vm216, 0.0
      $region32: #{tpu_custom_call.1} parent=27 // pred_fallthru
        _
      %v225 = vld [vmem:[%s1] sm:$0xff]
      %v226 = vld [vmem:[%s1 + $0x8] sm:$0xff]
      %v227 = vld [vmem:[%s1 + $0x10] sm:$0xff]
      %v228 = vld [vmem:[%s1 + $0x18] sm:$0xff]
      %v229 = vld [vmem:[%s200] sm:$0xff]
      %v231 = vcombine.high %v229, %v229
      %vm232 = vcmask 31744
      %v234 = vsel %vm232, %v225, 0
      %v237 = vsel %vm232, %v226, 0
      %v240 = vsel %vm232, %v227, 0
      %v243 = vsel %vm232, %v228, 0
      %vm245 = vcmask 1043456
      %v246 = vsel %vm245, %v229, 0
      %v248 = vsel %vm245, %v231, 0
      %250 = vmatprep.subr.mxu0 %v248
      %251 = vmatpush1.msra.mxu0 %v246
      %252 = vmatprep.subr.mxu0 0.0
      %253 = vmatpush1.msra.mxu0 0.0
      %254 = vmatprep.subr.mxu0 0.0
      %255 = vmatpush1.msra.mxu0 0.0
      %256 = vmatprep.subr.mxu0 0.0
      %257 = vmatpush1.msra.mxu0 0.0
      %258 = vmatprep.subr.mxu0 0.0
      %259 = vmatpush1.msra.mxu0 0.0
      %260 = vmatprep.subr.mxu0 0.0
      %261 = vmatpush1.msra.mxu0 0.0
      %262 = vmatprep.subr.mxu0 0.0
      %263 = vmatpush1.msra.mxu0 0.0
      %264 = vmatprep.subr.mxu0 0.0
      %265 = vmatpush1.msra.mxu0 0.0
      %266 = vmatprep.subr.mxu0 0.0
      %267 = vmatpush1.msra.mxu0 0.0
      %268 = vmatprep.subr.mxu0 0.0
      %269 = vmatpush1.msra.mxu0 0.0
      %270 = vmatprep.subr.mxu0 0.0
      %271 = vmatpush1.msra.mxu0 0.0
      %272 = vmatprep.subr.mxu0 0.0
      %273 = vmatpush1.msra.mxu0 0.0
      %274 = vmatprep.subr.mxu0 0.0
      %275 = vmatpush1.msra.mxu0 0.0
      %276 = vmatprep.subr.mxu0 0.0
      %277 = vmatpush1.msra.mxu0 0.0
      %278 = vmatprep.subr.mxu0 0.0
      %279 = vmatpush1.msra.mxu0 0.0
      %280 = vmatprep.subr.mxu0 0.0
      %281 = vmatpush1.msra.mxu0 0.0
      %282 = vmatprep.subr.mxu0 0.0
      %283 = vmatpush1.msra.mxu0 0.0
      %284 = vmatprep.subr.mxu0 0.0
      %285 = vmatpush1.msra.mxu0 0.0
      %286 = vmatprep.subr.mxu0 0.0
      %287 = vmatpush1.msra.mxu0 0.0
      %288 = vmatprep.subr.mxu0 0.0
      %289 = vmatpush1.msra.mxu0 0.0
      %290 = vmatprep.subr.mxu0 0.0
      %291 = vmatpush1.msra.mxu0 0.0
      %292 = vmatprep.subr.mxu0 0.0
      %293 = vmatpush1.msra.mxu0 0.0
      %294 = vmatprep.subr.mxu0 0.0
      %295 = vmatpush1.msra.mxu0 0.0
      %296 = vmatprep.subr.mxu0 0.0
      %297 = vmatpush1.msra.mxu0 0.0
      %298 = vmatprep.subr.mxu0 0.0
      %299 = vmatpush1.msra.mxu0 0.0
      %300 = vmatprep.subr.mxu0 0.0
      %301 = vmatpush1.msra.mxu0 0.0
      %302 = vmatprep.subr.mxu0 0.0
      %303 = vmatpush1.msra.mxu0 0.0
      %304 = vmatprep.subr.mxu0 0.0
      %305 = vmatpush1.msra.mxu0 0.0
      %306 = vmatprep.subr.mxu0 0.0
      %307 = vmatpush1.msra.mxu0 0.0
      %308 = vmatprep.subr.mxu0 0.0
      %309 = vmatpush1.msra.mxu0 0.0
      %310 = vmatprep.subr.mxu0 0.0
      %311 = vmatpush1.msra.mxu0 0.0
      %312 = vmatprep.subr.mxu0 0.0
      %313 = vmatpush1.msra.mxu0 0.0
      %314 = vmatprep.mubr.f32.mxu0 0.0
      %315 = vmatmul.mubr.f32.gmra.mrb[0].mxu0 %v234
      %v316 = vpop.f32.mrb[0].mxu0
      %v317 = vadd.f32 0.0, %v316
      %v318 = vpop.f32.mrb[0].mxu0
      %v319 = vadd.f32 0.0, %v318
      %320 = vmatprep.mubr.f32.mxu0 0.0
      %321 = vmatmul.mubr.f32.gmra.mrb[0].mxu0 %v237
      %v322 = vpop.f32.mrb[0].mxu0
      %v323 = vadd.f32 0.0, %v322
      %v324 = vpop.f32.mrb[0].mxu0
      %v325 = vadd.f32 0.0, %v324
      %326 = vmatprep.mubr.f32.mxu0 0.0
      %327 = vmatmul.mubr.f32.gmra.mrb[0].mxu0 %v240
      %v328 = vpop.f32.mrb[0].mxu0
      %v329 = vadd.f32 0.0, %v328
      %v330 = vpop.f32.mrb[0].mxu0
      %v331 = vadd.f32 0.0, %v330
      %332 = vmatprep.mubr.f32.mxu0 0.0
      %333 = vmatmul.mubr.f32.gmra.mrb[0].mxu0 %v243
      %v334 = vpop.f32.mrb[0].mxu0
      %v335 = vadd.f32 0.0, %v334
      %v336 = vpop.f32.mrb[0].mxu0
      %v337 = vadd.f32 0.0, %v336
      %338 = vdwg.mxu0
      %v339 = vld [vmem:[%s206] sm:$0xff]
      %v340 = vld [vmem:[%s206 + $0x8] sm:$0xff]
      %v341 = vld [vmem:[%s206 + $0x10] sm:$0xff]
      %v342 = vld [vmem:[%s206 + $0x18] sm:$0xff]
      %v343 = vadd.f32 %v317, %v319
      %344 = vadd.xlane.f32.xlu0 %v343
      %v345 = vpop.xlane.xlu0 %344
      %v346 = vadd.f32 %v323, %v325
      %347 = vadd.xlane.f32.xlu0 %v346
      %v348 = vpop.xlane.xlu0 %347
      %v349 = vadd.f32 %v329, %v331
      %350 = vadd.xlane.f32.xlu0 %v349
      %v351 = vpop.xlane.xlu0 %350
      %v352 = vadd.f32 %v335, %v337
      %353 = vadd.xlane.f32.xlu0 %v352
      %v354 = vpop.xlane.xlu0 %353
      %v355 = vadd.f32 %v339, %v345
      %v356 = vadd.f32 %v340, %v348
      %v357 = vadd.f32 %v341, %v351
      %v358 = vadd.f32 %v342, %v354
      %vm359 = vcmask 7168
      %360 = vst.msk [vmem:[%s206] sm:$0xff] %vm359, %v355
      %361 = vst.msk [vmem:[%s206 + $0x8] sm:$0xff] %vm359, %v356
      %362 = vst.msk [vmem:[%s206 + $0x10] sm:$0xff] %vm359, %v357
      %363 = vst.msk [vmem:[%s206 + $0x18] sm:$0xff] %vm359, %v358
      %v364 = vld [vmem:[%s211] sm:$0xff]
      %v365 = vld [vmem:[%s211 + $0x8] sm:$0xff]
      %v366 = vld [vmem:[%s211 + $0x10] sm:$0xff]
      %v367 = vld [vmem:[%s211 + $0x18] sm:$0xff]
      %v368 = vmul.f32 %v317, %v317
      %v369 = vmul.f32 %v319, %v319
      %v370 = vmul.f32 %v323, %v323
      %v371 = vmul.f32 %v325, %v325
      %v372 = vmul.f32 %v329, %v329
      %v373 = vmul.f32 %v331, %v331
      %v374 = vmul.f32 %v335, %v335
      %v375 = vmul.f32 %v337, %v337
      %v376 = vadd.f32 %v368, %v369
      %377 = vadd.xlane.f32.xlu0 %v376
      %v378 = vpop.xlane.xlu0 %377
      %v379 = vadd.f32 %v370, %v371
      %380 = vadd.xlane.f32.xlu0 %v379
      %v381 = vpop.xlane.xlu0 %380
      %v382 = vadd.f32 %v372, %v373
      %383 = vadd.xlane.f32.xlu0 %v382
      %v384 = vpop.xlane.xlu0 %383
      %v385 = vadd.f32 %v374, %v375
      %386 = vadd.xlane.f32.xlu0 %v385
      %v387 = vpop.xlane.xlu0 %386
      %v388 = vadd.f32 %v364, %v378
      %v389 = vadd.f32 %v365, %v381
      %v390 = vadd.f32 %v366, %v384
      %v391 = vadd.f32 %v367, %v387
      %392 = vst.msk [vmem:[%s211] sm:$0xff] %vm359, %v388
      %393 = vst.msk [vmem:[%s211 + $0x8] sm:$0xff] %vm359, %v389
      %394 = vst.msk [vmem:[%s211 + $0x10] sm:$0xff] %vm359, %v390
      %395 = vst.msk [vmem:[%s211 + $0x18] sm:$0xff] %vm359, %v391
      %p396 = scmp.lt.s32.totalorder %s19, 1
      %s397 = scalar_select %p396, %s19, 1
      %s398 = smul.addr %s397, 4
      %s399 = smul.addr %s398, 8
      %s400 = scalar_lea.vmem %s2, %s399
      %p401 = scmp.lt.s32.totalorder %s19, 1
      %s402 = scalar_select %p401, %s19, 1
      %s403 = smul.addr %s402, 4
      %s404 = smul.addr %s403, 8
      %s405 = scalar_lea.vmem %s3, %s404
      // Predicated region
      $region33: #{tpu_custom_call.1} parent=27 // pred_check
        %p406 = pneg %p94
      $region34: #{tpu_custom_call.1} parent=27 // pred_check_branch
        %408 = sbr.rel (%p406) target = $region36
      $region35: #{tpu_custom_call.1} parent=27 // pred_region
        _
      $region36: #{tpu_custom_call.1} parent=27 // pred_fallthru
        _
      // Predicated region
      $region37: #{tpu_custom_call.1} parent=27 // pred_check
        %p409 = pneg %p120
      $region38: #{tpu_custom_call.1} parent=27 // pred_check_branch
        %411 = sbr.rel (%p409) target = $region40
      $region39: #{tpu_custom_call.1} parent=27 // pred_region
        _
      $region40: #{tpu_custom_call.1} parent=27 // pred_fallthru
        _
    $region28: #{tpu_custom_call.1} parent=5 // pred_fallthru
      _
    %p412 = scmp.le.s32.totalorder 2, %s10
    // Predicated region
    $region41: #{tpu_custom_call.1} parent=5 // pred_check
      %p413 = pneg %p412
    $region42: #{tpu_custom_call.1} parent=5 // pred_check_branch
      %415 = sbr.rel (%p413) target = $region44
    $region43: #{tpu_custom_call.1} parent=5 // pred_region
      %s416 = ssub.s32 %s10, 2
      // Predicated region
      $region45: #{tpu_custom_call.1} parent=43 // pred_check
        %p417 = pneg %p100
      $region46: #{tpu_custom_call.1} parent=43 // pred_check_branch
        %419 = sbr.rel (%p417) target = $region48
      $region47: #{tpu_custom_call.1} parent=43 // pred_region
        %p420 = scmp.lt.s32.totalorder %s21, 1
        %s421 = scalar_select %p420, %s21, 1
        %s422 = smul.addr %s421, 4
        %s423 = smul.addr %s422, 8
        %s424 = scalar_lea.vmem %s2, %s423
      $region48: #{tpu_custom_call.1} parent=43 // pred_fallthru
        _
      // Predicated region
      $region49: #{tpu_custom_call.1} parent=43 // pred_check
        %p425 = pneg %p126
      $region50: #{tpu_custom_call.1} parent=43 // pred_check_branch
        %427 = sbr.rel (%p425) target = $region52
      $region51: #{tpu_custom_call.1} parent=43 // pred_region
        %p428 = scmp.lt.s32.totalorder %s21, 1
        %s429 = scalar_select %p428, %s21, 1
        %s430 = smul.addr %s429, 4
        %s431 = smul.addr %s430, 8
        %s432 = scalar_lea.vmem %s3, %s431
      $region52: #{tpu_custom_call.1} parent=43 // pred_fallthru
        _
    $region44: #{tpu_custom_call.1} parent=5 // pred_fallthru
      _
  $region6: #{tpu_custom_call.1} parent=0 // loop_footer
    %s14 = sadd.s32 1, %s10
  $region7: #{tpu_custom_call.1} parent=0 // loop_footer_branch
    %9 = sbr.rel target = $region3
  $region8: #{tpu_custom_call.1} parent=0 // loop_exit
    _

</llo_original>
